<compile_context>
chip_gen: v5e
topology: v5e:2x2
jax: 0.10.0
libtpu: 0.0.40
codegen_flags: <defaults>
</compile_context>

<pallas_src>
import functools

import jax
import jax.numpy as jnp
from jax.experimental import pallas as pl
from jax.experimental.pallas import tpu as pltpu

FC_HIDDEN = 256   # ForwardNet / InverseNet hidden size (hardcoded in the PyTorch module)
FWD_OUT = 288     # ForwardNet output size (hardcoded in the PyTorch module)
_LANE = 128


def _round_up(x, m):
    return ((x + m - 1) // m) * m


def _adversarial_head_kernel(
    cur_ref,            # (TB, P)  bf16 : phi(s_t) in lanes [0, F), zeros elsewhere
    nxt_ref,            # (TB, P)  bf16 : phi(s_{t+1}) in lanes [F, 2F), zeros elsewhere
    act_ref,            # (TB, 1)  int32 action ids
    wfa_ref, bfa_ref,   # fwd_att : Linear(F+A, F+A) padded to (P, P) bf16 / (1, P) f32
    wia_ref, bia_ref,   # inv_att : Linear(2F, 2F)   padded to (P, P)
    w1_ref, b1_ref,     # fwd_net.fc1 : Linear(F+A, 256) -> (P, 256)
    w2_ref, b2_ref,     # fwd_net.fc2 : Linear(256, 288) -> (256, 384)
    w3_ref, b3_ref,     # inv_net.fc1 : Linear(2F, 256)  -> (P, 256)
    w4_ref, b4_ref,     # inv_net.fc2 : Linear(256, A)   -> (256, 128)
    out_ref,            # (TB, 384 + 128) bf16 : [ next_pred | action_pred ]
    *, feat_size, num_actions, fwd_cols,
):
    f32, bf16 = jnp.float32, jnp.bfloat16
    fa_valid = feat_size + num_actions          # valid lanes of fwd_cat
    ff_valid = 2 * feat_size                    # valid lanes of inv_cat

    cur = cur_ref[...].astype(f32)              # (TB, P)
    nxt = nxt_ref[...].astype(f32)              # (TB, P), already offset to [F, 2F)

    cols = jax.lax.broadcasted_iota(jnp.int32, cur.shape, 1)
    # one-hot(action) placed at lanes [F, F+A), i.e. cat(phi(s_t), a_onehot)
    one_hot = (cols == act_ref[...] + feat_size).astype(f32)

    fwd_cat = cur + one_hot                     # [ phi(s_t) | onehot(a) | 0 ]
    inv_cat = cur + nxt                         # [ phi(s_t) | phi(s_{t+1}) | 0 ]

    def attend(cat, w_ref, b_ref, valid):
        # AttentionNet: target * softmax(Linear(target)), softmax over valid lanes only.
        logits = jnp.dot(cat.astype(bf16), w_ref[...],
                         preferred_element_type=f32) + b_ref[...]
        logits = jnp.where(cols < valid, logits, -1e30)   # padded lanes -> exp == 0
        m = jnp.max(logits, axis=-1, keepdims=True)
        e = jnp.exp(logits - m)
        s = jnp.sum(e, axis=-1, keepdims=True)
        gate = e * pl.reciprocal(s, approx=True)
        return (cat * gate).astype(bf16)

    # ---- Forward dynamics branch ----
    fwd_in = attend(fwd_cat, wfa_ref, bfa_ref, fa_valid)
    h_f = jnp.dot(fwd_in, w1_ref[...], preferred_element_type=f32) + b1_ref[...]
    next_pred = jnp.dot(h_f.astype(bf16), w2_ref[...],
                        preferred_element_type=f32) + b2_ref[...]

    # ---- Inverse dynamics branch ----
    inv_in = attend(inv_cat, wia_ref, bia_ref, ff_valid)
    h_i = jnp.dot(inv_in, w3_ref[...], preferred_element_type=f32) + b3_ref[...]
    action_pred = jnp.dot(h_i.astype(bf16), w4_ref[...],
                          preferred_element_type=f32) + b4_ref[...]

    # Single lane-dense output slab: [ next_pred (384) | action_pred (128) ]
    out_ref[:, :fwd_cols] = next_pred.astype(out_ref.dtype)
    out_ref[:, fwd_cols:] = action_pred.astype(out_ref.dtype)


def init_params(key, feat_size, num_actions):
    """Deterministic synthetic init: orthogonal weights + zero bias for fwd/inv nets
    (matching the module's init_); scaled-normal for the attention Linears."""
    fa = feat_size + num_actions
    ff = 2 * feat_size
    ks = jax.random.split(key, 6)
    ortho = jax.nn.initializers.orthogonal()
    f32 = jnp.float32
    return {
        "w_fwd_att": jax.random.normal(ks[0], (fa, fa), f32) / jnp.sqrt(fa),
        "b_fwd_att": jnp.zeros((1, fa), f32),
        "w_inv_att": jax.random.normal(ks[1], (ff, ff), f32) / jnp.sqrt(ff),
        "b_inv_att": jnp.zeros((1, ff), f32),
        "w1": ortho(ks[2], (fa, FC_HIDDEN), f32),
        "b1": jnp.zeros((1, FC_HIDDEN), f32),
        "w2": ortho(ks[3], (FC_HIDDEN, FWD_OUT), f32),
        "b2": jnp.zeros((1, FWD_OUT), f32),
        "w3": ortho(ks[4], (ff, FC_HIDDEN), f32),
        "b3": jnp.zeros((1, FC_HIDDEN), f32),
        "w4": ortho(ks[5], (FC_HIDDEN, num_actions), f32),
        "b4": jnp.zeros((1, num_actions), f32),
    }


def pack_params(params, feat_size, num_actions):
    """One-time packing: zero-pad every weight/bias to lane-aligned (multiple-of-128)
    shapes and cast weights to bf16 for the MXU (biases stay f32)."""
    fa = feat_size + num_actions
    ff = 2 * feat_size
    p_cat = _round_up(max(fa, ff), _LANE)     # common padded width of both cats
    p_out = _round_up(FWD_OUT, _LANE)
    p_act = _round_up(num_actions, _LANE)

    def pad_w(w, rows, cols):
        return jnp.pad(w, ((0, rows - w.shape[0]), (0, cols - w.shape[1]))
                       ).astype(jnp.bfloat16)

    def pad_b(b, cols):
        return jnp.pad(b, ((0, 0), (0, cols - b.shape[1]))).astype(jnp.float32)

    return {
        "w_fwd_att": pad_w(params["w_fwd_att"], p_cat, p_cat),
        "b_fwd_att": pad_b(params["b_fwd_att"], p_cat),
        "w_inv_att": pad_w(params["w_inv_att"], p_cat, p_cat),
        "b_inv_att": pad_b(params["b_inv_att"], p_cat),
        "w1": pad_w(params["w1"], p_cat, FC_HIDDEN),
        "b1": pad_b(params["b1"], FC_HIDDEN),
        "w2": pad_w(params["w2"], FC_HIDDEN, p_out),
        "b2": pad_b(params["b2"], p_out),
        "w3": pad_w(params["w3"], p_cat, FC_HIDDEN),
        "b3": pad_b(params["b3"], FC_HIDDEN),
        "w4": pad_w(params["w4"], FC_HIDDEN, p_act),
        "b4": pad_b(params["b4"], p_act),
    }


def _choose_tb(batch):
    """Adaptive batch tile: single small tile for tiny batches, >=2 grid steps for
    mid-size batches (v7x has 2 TensorCores), minimal-padding 128/256/512 otherwise."""
    b8 = _round_up(batch, 8)
    if b8 <= 128:
        return b8                      # one tile; splitting only adds ~0.35us/step overhead
    if b8 <= 256:
        return 128                     # >=2 parallel grid steps -> both v7x TCs get work
    best_tb, best_pad = 512, None
    for tb in (512, 256, 128):         # prefer the largest tile when padding waste ties
        pad = _round_up(b8, tb) - b8
        if best_pad is None or pad < best_pad:
            best_tb, best_pad = tb, pad
    return best_tb


def adversarial_head_forward(current_feature, next_feature, action, packed,
                             feat_size, num_actions):
    B = current_feature.shape[0]
    fa = feat_size + num_actions
    ff = 2 * feat_size
    p_cat = _round_up(max(fa, ff), _LANE)
    p_out = _round_up(FWD_OUT, _LANE)
    p_act = _round_up(num_actions, _LANE)
    p_tot = p_out + p_act

    tb = _choose_tb(B)
    b_pad = _round_up(B, tb)

    bf16 = jnp.bfloat16
    # Fused glue: only two cheap pad+cast ops and an int32 reshape; one-hot, both
    # concatenations and the gating are built inside the kernel.
    cur_p = jnp.pad(current_feature.astype(bf16),
                    ((0, b_pad - B), (0, p_cat - feat_size)))
    nxt_p = jnp.pad(next_feature.astype(bf16),
                    ((0, b_pad - B), (feat_size, p_cat - 2 * feat_size)))
    act_p = jnp.pad(action.astype(jnp.int32).reshape(B, 1), ((0, b_pad - B), (0, 0)))

    weights = (
        packed["w_fwd_att"], packed["b_fwd_att"],
        packed["w_inv_att"], packed["b_inv_att"],
        packed["w1"], packed["b1"], packed["w2"], packed["b2"],
        packed["w3"], packed["b3"], packed["w4"], packed["b4"],
    )

    def row_spec(cols):
        return pl.BlockSpec((tb, cols), lambda i: (i, 0))

    def const_spec(arr):
        # Constant block index -> weights stay VMEM-resident across grid steps.
        return pl.BlockSpec(arr.shape, lambda i: (0, 0))

    flops = 2 * b_pad * (2 * p_cat * p_cat + 2 * p_cat * FC_HIDDEN
                         + FC_HIDDEN * p_out + FC_HIDDEN * p_act)
    w_bytes = sum(int(w.size) * w.dtype.itemsize for w in weights)
    bytes_accessed = int(b_pad * (2 * p_cat * 2 + 4 + p_tot * 2) + w_bytes)
    cost = pl.CostEstimate(flops=int(flops),
                           transcendentals=int(2 * b_pad * p_cat),
                           bytes_accessed=bytes_accessed)

    kernel = functools.partial(_adversarial_head_kernel,
                               feat_size=feat_size, num_actions=num_actions,
                               fwd_cols=p_out)

    out = pl.pallas_call(
        kernel,
        out_shape=jax.ShapeDtypeStruct((b_pad, p_tot), bf16),
        grid=(b_pad // tb,),
        in_specs=[row_spec(p_cat), row_spec(p_cat),
                  pl.BlockSpec((tb, 1), lambda i: (i, 0))]
                 + [const_spec(w) for w in weights],
        out_specs=row_spec(p_tot),
        compiler_params=pltpu.CompilerParams(dimension_semantics=("parallel",)),
        cost_estimate=cost,
    )(cur_p, nxt_p, act_p, *weights)

    next_pred = out[:B, :FWD_OUT]
    action_pred = out[:B, p_out:p_out + num_actions]
    return next_pred, action_pred


def _reference_forward(current_feature, next_feature, action, params, num_actions):
    """Pure-JAX reference mirroring the kernel's dtype policy (bf16 MXU inputs,
    f32 accumulation, f32 softmax/gating)."""
    bf16, f32 = jnp.bfloat16, jnp.float32

    def dot(a, w):
        return jnp.dot(a.astype(bf16), w.astype(bf16), preferred_element_type=f32)

    cur = current_feature.astype(bf16).astype(f32)
    nxt = next_feature.astype(bf16).astype(f32)
    aoh = jax.nn.one_hot(action, num_actions, dtype=f32)

    fwd_cat = jnp.concatenate([cur, aoh], axis=-1)
    fwd_gate = jax.nn.softmax(dot(fwd_cat, params["w_fwd_att"]) + params["b_fwd_att"], axis=-1)
    fwd_in = fwd_cat * fwd_gate
    next_pred = dot(dot(fwd_in, params["w1"]) + params["b1"], params["w2"]) + params["b2"]

    inv_cat = jnp.concatenate([cur, nxt], axis=-1)
    inv_gate = jax.nn.softmax(dot(inv_cat, params["w_inv_att"]) + params["b_inv_att"], axis=-1)
    inv_in = inv_cat * inv_gate
    action_pred = dot(dot(inv_in, params["w3"]) + params["b3"], params["w4"]) + params["b4"]
    return next_pred, action_pred


if __name__ == "__main__":
    # small shapes consistent with the module
    batch, feat_size, num_actions = 8, 32, 8

    key = jax.random.PRNGKey(0)
    k_cur, k_nxt, k_act, k_par = jax.random.split(key, 4)
    current_feature = jax.random.normal(k_cur, (batch, feat_size), jnp.float32)
    next_feature = jax.random.normal(k_nxt, (batch, feat_size), jnp.float32)
    action = jax.random.randint(k_act, (batch,), 0, num_actions)

    params = init_params(k_par, feat_size, num_actions)
    packed = pack_params(params, feat_size, num_actions)

    next_pred, action_pred = adversarial_head_forward(
        current_feature, next_feature, action, packed, feat_size, num_actions)
    jax.block_until_ready((next_pred, action_pred))

    ref_next, ref_act = _reference_forward(
        current_feature, next_feature, action, params, num_actions)

    assert next_pred.shape == (batch, FWD_OUT)
    assert action_pred.shape == (batch, num_actions)
    # bf16 I/O + bf16 MXU inputs + approx reciprocal -> compare against the
    # dtype-matched reference with a tolerance above bf16 quantization noise.
    assert jnp.allclose(next_pred.astype(jnp.float32), ref_next, atol=2e-2, rtol=2e-2)
    assert jnp.allclose(action_pred.astype(jnp.float32), ref_act, atol=2e-2, rtol=2e-2)

    print("KERNEL_OK")
</pallas_src>

<mosaic_0001>
module attributes {stable_mosaic.version = 11 : i64} {
  func.func @_adversarial_head_kernel(%arg0: i32, %arg1: memref<8x128xbf16, #tpu.memory_space<vmem>>, %arg2: memref<8x128xbf16, #tpu.memory_space<vmem>>, %arg3: memref<8x1xi32, #tpu.memory_space<vmem>>, %arg4: memref<128x128xbf16, #tpu.memory_space<vmem>>, %arg5: memref<1x128xf32, #tpu.memory_space<vmem>>, %arg6: memref<128x128xbf16, #tpu.memory_space<vmem>>, %arg7: memref<1x128xf32, #tpu.memory_space<vmem>>, %arg8: memref<128x256xbf16, #tpu.memory_space<vmem>>, %arg9: memref<1x256xf32, #tpu.memory_space<vmem>>, %arg10: memref<256x384xbf16, #tpu.memory_space<vmem>>, %arg11: memref<1x384xf32, #tpu.memory_space<vmem>>, %arg12: memref<128x256xbf16, #tpu.memory_space<vmem>>, %arg13: memref<1x256xf32, #tpu.memory_space<vmem>>, %arg14: memref<256x128xbf16, #tpu.memory_space<vmem>>, %arg15: memref<1x128xf32, #tpu.memory_space<vmem>>, %arg16: memref<8x512xbf16, #tpu.memory_space<vmem>>) attributes {dimension_semantics = [#tpu.dimension_semantics<parallel>], iteration_bounds = array<i64: 1>, scalar_prefetch = 0 : i64, scratch_operands = 0 : i64, tpu.core_type = #tpu.core_type<tc>, window_params = [{transform_indices = @transform_0, window_bounds = array<i64: 8, 128>}, {transform_indices = @transform_1, window_bounds = array<i64: 8, 128>}, {transform_indices = @transform_2, window_bounds = array<i64: 8, 1>}, {pipeline_mode = #tpu.pipeline_mode<synchronous>, transform_indices = @transform_3, window_bounds = array<i64: 128, 128>}, {pipeline_mode = #tpu.pipeline_mode<synchronous>, transform_indices = @transform_4, window_bounds = array<i64: 1, 128>}, {pipeline_mode = #tpu.pipeline_mode<synchronous>, transform_indices = @transform_5, window_bounds = array<i64: 128, 128>}, {pipeline_mode = #tpu.pipeline_mode<synchronous>, transform_indices = @transform_6, window_bounds = array<i64: 1, 128>}, {pipeline_mode = #tpu.pipeline_mode<synchronous>, transform_indices = @transform_7, window_bounds = array<i64: 128, 256>}, {pipeline_mode = #tpu.pipeline_mode<synchronous>, transform_indices = @transform_8, window_bounds = array<i64: 1, 256>}, {pipeline_mode = #tpu.pipeline_mode<synchronous>, transform_indices = @transform_9, window_bounds = array<i64: 256, 384>}, {pipeline_mode = #tpu.pipeline_mode<synchronous>, transform_indices = @transform_10, window_bounds = array<i64: 1, 384>}, {pipeline_mode = #tpu.pipeline_mode<synchronous>, transform_indices = @transform_11, window_bounds = array<i64: 128, 256>}, {pipeline_mode = #tpu.pipeline_mode<synchronous>, transform_indices = @transform_12, window_bounds = array<i64: 1, 256>}, {pipeline_mode = #tpu.pipeline_mode<synchronous>, transform_indices = @transform_13, window_bounds = array<i64: 256, 128>}, {pipeline_mode = #tpu.pipeline_mode<synchronous>, transform_indices = @transform_14, window_bounds = array<i64: 1, 128>}, {transform_indices = @transform_15, window_bounds = array<i64: 8, 512>}]} {
    %c0 = arith.constant 0 : index
    %c0_0 = arith.constant 0 : index
    %0 = vector.load %arg1[%c0, %c0_0] : memref<8x128xbf16, #tpu.memory_space<vmem>>, vector<8x128xbf16>
    %1 = arith.extf %0 : vector<8x128xbf16> to vector<8x128xf32>
    %c0_1 = arith.constant 0 : index
    %c0_2 = arith.constant 0 : index
    %2 = vector.load %arg2[%c0_1, %c0_2] : memref<8x128xbf16, #tpu.memory_space<vmem>>, vector<8x128xbf16>
    %3 = arith.extf %2 : vector<8x128xbf16> to vector<8x128xf32>
    %4 = tpu.iota {dimensions = array<i32: 1>} : vector<8x128xi32>
    %c0_3 = arith.constant 0 : index
    %c0_4 = arith.constant 0 : index
    %5 = vector.load %arg3[%c0_3, %c0_4] : memref<8x1xi32, #tpu.memory_space<vmem>>, vector<8x1xi32>
    %c32_i32 = arith.constant 32 : i32
    %6 = vector.broadcast %c32_i32 : i32 to vector<8x1xi32>
    %7 = arith.addi %5, %6 : vector<8x1xi32>
    %8 = vector.broadcast %7 : vector<8x1xi32> to vector<8x128xi32>
    %9 = arith.cmpi eq, %4, %8 : vector<8x128xi32>
    %10 = arith.extui %9 : vector<8x128xi1> to vector<8x128xi32>
    %11 = arith.sitofp %10 : vector<8x128xi32> to vector<8x128xf32>
    %12 = arith.addf %1, %11 : vector<8x128xf32>
    %13 = arith.addf %1, %3 : vector<8x128xf32>
    %14 = arith.truncf %12 : vector<8x128xf32> to vector<8x128xbf16>
    %c0_5 = arith.constant 0 : index
    %c0_6 = arith.constant 0 : index
    %15 = vector.load %arg4[%c0_5, %c0_6] : memref<128x128xbf16, #tpu.memory_space<vmem>>, vector<128x128xbf16>
    %cst = arith.constant dense<0.000000e+00> : vector<8x128xf32>
    %16 = tpu.matmul %14, %15, %cst {dimension_numbers = #tpu.dot_dimension_numbers<[1], [0], [0], [1], [0, 0, 1, 1], [], []>} : vector<8x128xbf16>, vector<128x128xbf16>, vector<8x128xf32> -> vector<8x128xf32>
    %c0_7 = arith.constant 0 : index
    %c0_8 = arith.constant 0 : index
    %17 = vector.load %arg5[%c0_7, %c0_8] : memref<1x128xf32, #tpu.memory_space<vmem>>, vector<1x128xf32>
    %18 = vector.broadcast %17 : vector<1x128xf32> to vector<8x128xf32>
    %19 = arith.addf %16, %18 : vector<8x128xf32>
    %c40_i32 = arith.constant 40 : i32
    %20 = vector.broadcast %c40_i32 : i32 to vector<8x128xi32>
    %21 = arith.cmpi slt, %4, %20 : vector<8x128xi32>
    %cst_9 = arith.constant -1.000000e+30 : f32
    %22 = vector.broadcast %cst_9 : f32 to vector<8x128xf32>
    %23 = arith.select %21, %19, %22 : vector<8x128xi1>, vector<8x128xf32>
    %cst_10 = arith.constant dense<0xFF800000> : vector<8xf32>
    %24 = vector.multi_reduction <maximumf>, %23, %cst_10 [1] : vector<8x128xf32> to vector<8xf32>
    %25 = vector.shape_cast %24 : vector<8xf32> to vector<8x1xf32>
    %26 = vector.broadcast %25 : vector<8x1xf32> to vector<8x128xf32>
    %27 = arith.subf %23, %26 : vector<8x128xf32>
    %28 = math.exp %27 : vector<8x128xf32>
    %cst_11 = arith.constant dense<0.000000e+00> : vector<8xf32>
    %29 = vector.multi_reduction <add>, %28, %cst_11 [1] : vector<8x128xf32> to vector<8xf32>
    %30 = vector.shape_cast %29 : vector<8xf32> to vector<8x1xf32>
    %31 = tpu.reciprocal %30 {approx = true} : vector<8x1xf32> -> vector<8x1xf32>
    %32 = vector.broadcast %31 : vector<8x1xf32> to vector<8x128xf32>
    %33 = arith.mulf %28, %32 : vector<8x128xf32>
    %34 = arith.mulf %12, %33 : vector<8x128xf32>
    %35 = arith.truncf %34 : vector<8x128xf32> to vector<8x128xbf16>
    %c0_12 = arith.constant 0 : index
    %c0_13 = arith.constant 0 : index
    %36 = vector.load %arg8[%c0_12, %c0_13] : memref<128x256xbf16, #tpu.memory_space<vmem>>, vector<128x256xbf16>
    %cst_14 = arith.constant dense<0.000000e+00> : vector<8x256xf32>
    %37 = tpu.matmul %35, %36, %cst_14 {dimension_numbers = #tpu.dot_dimension_numbers<[1], [0], [0], [1], [0, 0, 1, 1], [], []>} : vector<8x128xbf16>, vector<128x256xbf16>, vector<8x256xf32> -> vector<8x256xf32>
    %c0_15 = arith.constant 0 : index
    %c0_16 = arith.constant 0 : index
    %38 = vector.load %arg9[%c0_15, %c0_16] : memref<1x256xf32, #tpu.memory_space<vmem>>, vector<1x256xf32>
    %39 = vector.broadcast %38 : vector<1x256xf32> to vector<8x256xf32>
    %40 = arith.addf %37, %39 : vector<8x256xf32>
    %41 = arith.truncf %40 : vector<8x256xf32> to vector<8x256xbf16>
    %c0_17 = arith.constant 0 : index
    %c0_18 = arith.constant 0 : index
    %42 = vector.load %arg10[%c0_17, %c0_18] : memref<256x384xbf16, #tpu.memory_space<vmem>>, vector<256x384xbf16>
    %cst_19 = arith.constant dense<0.000000e+00> : vector<8x384xf32>
    %43 = tpu.matmul %41, %42, %cst_19 {dimension_numbers = #tpu.dot_dimension_numbers<[1], [0], [0], [1], [0, 0, 1, 1], [], []>} : vector<8x256xbf16>, vector<256x384xbf16>, vector<8x384xf32> -> vector<8x384xf32>
    %c0_20 = arith.constant 0 : index
    %c0_21 = arith.constant 0 : index
    %44 = vector.load %arg11[%c0_20, %c0_21] : memref<1x384xf32, #tpu.memory_space<vmem>>, vector<1x384xf32>
    %45 = vector.broadcast %44 : vector<1x384xf32> to vector<8x384xf32>
    %46 = arith.addf %43, %45 : vector<8x384xf32>
    %47 = arith.truncf %13 : vector<8x128xf32> to vector<8x128xbf16>
    %c0_22 = arith.constant 0 : index
    %c0_23 = arith.constant 0 : index
    %48 = vector.load %arg6[%c0_22, %c0_23] : memref<128x128xbf16, #tpu.memory_space<vmem>>, vector<128x128xbf16>
    %cst_24 = arith.constant dense<0.000000e+00> : vector<8x128xf32>
    %49 = tpu.matmul %47, %48, %cst_24 {dimension_numbers = #tpu.dot_dimension_numbers<[1], [0], [0], [1], [0, 0, 1, 1], [], []>} : vector<8x128xbf16>, vector<128x128xbf16>, vector<8x128xf32> -> vector<8x128xf32>
    %c0_25 = arith.constant 0 : index
    %c0_26 = arith.constant 0 : index
    %50 = vector.load %arg7[%c0_25, %c0_26] : memref<1x128xf32, #tpu.memory_space<vmem>>, vector<1x128xf32>
    %51 = vector.broadcast %50 : vector<1x128xf32> to vector<8x128xf32>
    %52 = arith.addf %49, %51 : vector<8x128xf32>
    %c64_i32 = arith.constant 64 : i32
    %53 = vector.broadcast %c64_i32 : i32 to vector<8x128xi32>
    %54 = arith.cmpi slt, %4, %53 : vector<8x128xi32>
    %cst_27 = arith.constant -1.000000e+30 : f32
    %55 = vector.broadcast %cst_27 : f32 to vector<8x128xf32>
    %56 = arith.select %54, %52, %55 : vector<8x128xi1>, vector<8x128xf32>
    %cst_28 = arith.constant dense<0xFF800000> : vector<8xf32>
    %57 = vector.multi_reduction <maximumf>, %56, %cst_28 [1] : vector<8x128xf32> to vector<8xf32>
    %58 = vector.shape_cast %57 : vector<8xf32> to vector<8x1xf32>
    %59 = vector.broadcast %58 : vector<8x1xf32> to vector<8x128xf32>
    %60 = arith.subf %56, %59 : vector<8x128xf32>
    %61 = math.exp %60 : vector<8x128xf32>
    %cst_29 = arith.constant dense<0.000000e+00> : vector<8xf32>
    %62 = vector.multi_reduction <add>, %61, %cst_29 [1] : vector<8x128xf32> to vector<8xf32>
    %63 = vector.shape_cast %62 : vector<8xf32> to vector<8x1xf32>
    %64 = tpu.reciprocal %63 {approx = true} : vector<8x1xf32> -> vector<8x1xf32>
    %65 = vector.broadcast %64 : vector<8x1xf32> to vector<8x128xf32>
    %66 = arith.mulf %61, %65 : vector<8x128xf32>
    %67 = arith.mulf %13, %66 : vector<8x128xf32>
    %68 = arith.truncf %67 : vector<8x128xf32> to vector<8x128xbf16>
    %c0_30 = arith.constant 0 : index
    %c0_31 = arith.constant 0 : index
    %69 = vector.load %arg12[%c0_30, %c0_31] : memref<128x256xbf16, #tpu.memory_space<vmem>>, vector<128x256xbf16>
    %cst_32 = arith.constant dense<0.000000e+00> : vector<8x256xf32>
    %70 = tpu.matmul %68, %69, %cst_32 {dimension_numbers = #tpu.dot_dimension_numbers<[1], [0], [0], [1], [0, 0, 1, 1], [], []>} : vector<8x128xbf16>, vector<128x256xbf16>, vector<8x256xf32> -> vector<8x256xf32>
    %c0_33 = arith.constant 0 : index
    %c0_34 = arith.constant 0 : index
    %71 = vector.load %arg13[%c0_33, %c0_34] : memref<1x256xf32, #tpu.memory_space<vmem>>, vector<1x256xf32>
    %72 = vector.broadcast %71 : vector<1x256xf32> to vector<8x256xf32>
    %73 = arith.addf %70, %72 : vector<8x256xf32>
    %74 = arith.truncf %73 : vector<8x256xf32> to vector<8x256xbf16>
    %c0_35 = arith.constant 0 : index
    %c0_36 = arith.constant 0 : index
    %75 = vector.load %arg14[%c0_35, %c0_36] : memref<256x128xbf16, #tpu.memory_space<vmem>>, vector<256x128xbf16>
    %cst_37 = arith.constant dense<0.000000e+00> : vector<8x128xf32>
    %76 = tpu.matmul %74, %75, %cst_37 {dimension_numbers = #tpu.dot_dimension_numbers<[1], [0], [0], [1], [0, 0, 1, 1], [], []>} : vector<8x256xbf16>, vector<256x128xbf16>, vector<8x128xf32> -> vector<8x128xf32>
    %c0_38 = arith.constant 0 : index
    %c0_39 = arith.constant 0 : index
    %77 = vector.load %arg15[%c0_38, %c0_39] : memref<1x128xf32, #tpu.memory_space<vmem>>, vector<1x128xf32>
    %78 = vector.broadcast %77 : vector<1x128xf32> to vector<8x128xf32>
    %79 = arith.addf %76, %78 : vector<8x128xf32>
    %80 = arith.truncf %46 : vector<8x384xf32> to vector<8x384xbf16>
    %c0_40 = arith.constant 0 : index
    %c0_41 = arith.constant 0 : index
    %81 = vector.load %arg16[%c0_40, %c0_41] : memref<8x512xbf16, #tpu.memory_space<vmem>>, vector<8x384xbf16>
    tpu.vector_store %arg16[%c0_40, %c0_41], %80 {strides = array<i32>} : memref<8x512xbf16, #tpu.memory_space<vmem>>, vector<8x384xbf16>,
    %82 = arith.truncf %79 : vector<8x128xf32> to vector<8x128xbf16>
    %c0_42 = arith.constant 0 : index
    %c384 = arith.constant 384 : index
    %83 = vector.load %arg16[%c0_42, %c384] : memref<8x512xbf16, #tpu.memory_space<vmem>>, vector<8x128xbf16>
    tpu.vector_store %arg16[%c0_42, %c384], %82 {strides = array<i32>} : memref<8x512xbf16, #tpu.memory_space<vmem>>, vector<8x128xbf16>,
    return
  }
  func.func @transform_0(%arg0: i32) -> (i32, i32) {
    %c0_i32 = arith.constant 0 : i32
    %c0_i32_0 = arith.constant 0 : i32
    return %arg0, %c0_i32 : i32, i32
  }
  func.func @transform_1(%arg0: i32) -> (i32, i32) {
    %c0_i32 = arith.constant 0 : i32
    %c0_i32_0 = arith.constant 0 : i32
    return %arg0, %c0_i32 : i32, i32
  }
  func.func @transform_2(%arg0: i32) -> (i32, i32) {
    %c0_i32 = arith.constant 0 : i32
    %c0_i32_0 = arith.constant 0 : i32
    return %arg0, %c0_i32 : i32, i32
  }
  func.func @transform_3(%arg0: i32) -> (i32, i32) {
    %c0_i32 = arith.constant 0 : i32
    %c0_i32_0 = arith.constant 0 : i32
    %c0_i32_1 = arith.constant 0 : i32
    return %c0_i32, %c0_i32_0 : i32, i32
  }
  func.func @transform_4(%arg0: i32) -> (i32, i32) {
    %c0_i32 = arith.constant 0 : i32
    %c0_i32_0 = arith.constant 0 : i32
    %c0_i32_1 = arith.constant 0 : i32
    return %c0_i32, %c0_i32_0 : i32, i32
  }
  func.func @transform_5(%arg0: i32) -> (i32, i32) {
    %c0_i32 = arith.constant 0 : i32
    %c0_i32_0 = arith.constant 0 : i32
    %c0_i32_1 = arith.constant 0 : i32
    return %c0_i32, %c0_i32_0 : i32, i32
  }
  func.func @transform_6(%arg0: i32) -> (i32, i32) {
    %c0_i32 = arith.constant 0 : i32
    %c0_i32_0 = arith.constant 0 : i32
    %c0_i32_1 = arith.constant 0 : i32
    return %c0_i32, %c0_i32_0 : i32, i32
  }
  func.func @transform_7(%arg0: i32) -> (i32, i32) {
    %c0_i32 = arith.constant 0 : i32
    %c0_i32_0 = arith.constant 0 : i32
    %c0_i32_1 = arith.constant 0 : i32
    return %c0_i32, %c0_i32_0 : i32, i32
  }
  func.func @transform_8(%arg0: i32) -> (i32, i32) {
    %c0_i32 = arith.constant 0 : i32
    %c0_i32_0 = arith.constant 0 : i32
    %c0_i32_1 = arith.constant 0 : i32
    return %c0_i32, %c0_i32_0 : i32, i32
  }
  func.func @transform_9(%arg0: i32) -> (i32, i32) {
    %c0_i32 = arith.constant 0 : i32
    %c0_i32_0 = arith.constant 0 : i32
    %c0_i32_1 = arith.constant 0 : i32
    return %c0_i32, %c0_i32_0 : i32, i32
  }
  func.func @transform_10(%arg0: i32) -> (i32, i32) {
    %c0_i32 = arith.constant 0 : i32
    %c0_i32_0 = arith.constant 0 : i32
    %c0_i32_1 = arith.constant 0 : i32
    return %c0_i32, %c0_i32_0 : i32, i32
  }
  func.func @transform_11(%arg0: i32) -> (i32, i32) {
    %c0_i32 = arith.constant 0 : i32
    %c0_i32_0 = arith.constant 0 : i32
    %c0_i32_1 = arith.constant 0 : i32
    return %c0_i32, %c0_i32_0 : i32, i32
  }
  func.func @transform_12(%arg0: i32) -> (i32, i32) {
    %c0_i32 = arith.constant 0 : i32
    %c0_i32_0 = arith.constant 0 : i32
    %c0_i32_1 = arith.constant 0 : i32
    return %c0_i32, %c0_i32_0 : i32, i32
  }
  func.func @transform_13(%arg0: i32) -> (i32, i32) {
    %c0_i32 = arith.constant 0 : i32
    %c0_i32_0 = arith.constant 0 : i32
    %c0_i32_1 = arith.constant 0 : i32
    return %c0_i32, %c0_i32_0 : i32, i32
  }
  func.func @transform_14(%arg0: i32) -> (i32, i32) {
    %c0_i32 = arith.constant 0 : i32
    %c0_i32_0 = arith.constant 0 : i32
    %c0_i32_1 = arith.constant 0 : i32
    return %c0_i32, %c0_i32_0 : i32, i32
  }
  func.func @transform_15(%arg0: i32) -> (i32, i32) {
    %c0_i32 = arith.constant 0 : i32
    %c0_i32_0 = arith.constant 0 : i32
    return %arg0, %c0_i32 : i32, i32
  }
}

</mosaic_0001>

<llo_original>
// kernel: tpu_custom_call.1
$region0: #{tpu_custom_call.1}
  #allocation0 [shape = 'u32[]', space=smem, size = 0x4, offset = 0x4, fixed_abs, tag = 'smem constant byte address 0x4 - core index']
  #allocation1 [shape = 'u32[72,128]{1,0:T(1,128)}', space=vmem, size = 0x9000, scoped, tag = 'internal scratch']
  %s0 = inlined_call_operand.vmem [shape: bf16[8,128], index: 0, kind: input, shape index: {}]
  %s1 = inlined_call_operand.vmem [shape: bf16[8,128], index: 1, kind: input, shape index: {}]
  %s2 = inlined_call_operand.vmem [shape: s32[8,1], index: 2, kind: input, shape index: {}]
  %s3 = inlined_call_operand.hbm [shape: bf16[128,128], index: 3, kind: input, shape index: {}]
  %s4 = inlined_call_operand.hbm [shape: f32[1,128], index: 4, kind: input, shape index: {}]
  %s5 = inlined_call_operand.hbm [shape: bf16[128,128], index: 5, kind: input, shape index: {}]
  %s6 = inlined_call_operand.hbm [shape: f32[1,128], index: 6, kind: input, shape index: {}]
  %s7 = inlined_call_operand.hbm [shape: bf16[128,256], index: 7, kind: input, shape index: {}]
  %s8 = inlined_call_operand.vmem [shape: f32[1,256], index: 8, kind: input, shape index: {}]
  %s9 = inlined_call_operand.hbm [shape: bf16[256,384], index: 9, kind: input, shape index: {}]
  %s10 = inlined_call_operand.vmem [shape: f32[1,384], index: 10, kind: input, shape index: {}]
  %s11 = inlined_call_operand.hbm [shape: bf16[128,256], index: 11, kind: input, shape index: {}]
  %s12 = inlined_call_operand.vmem [shape: f32[1,256], index: 12, kind: input, shape index: {}]
  %s13 = inlined_call_operand.hbm [shape: bf16[256,128], index: 13, kind: input, shape index: {}]
  %s14 = inlined_call_operand.vmem [shape: f32[1,128], index: 14, kind: input, shape index: {}]
  %s15 = inlined_call_operand.hbm [shape: bf16[8,512], index: 15, kind: output, shape index: {}]
  %s16 = sld [smem:[#allocation0]]
  $region102: #{tpu_custom_call.1} parent=0
    _
  %s18 = ssub.s32 1, %s16
  %s19 = scalar_select 0, %s18, %s16
  $region1: #{tpu_custom_call.1} parent=0
    #allocation2 [shape = 'u8[32768]{0}', space=vmem, size = 0x8000, scoped, tag = 'input window, operand 3, single buffered']
    #allocation3 [shape = 's32[1]{0}', space=sflag, size = 0x4, scoped, tag = 'scoped memory for tpu_custom_call.1']
    #allocation4 [shape = 's32[1]{0}', space=sflag, size = 0x4, scoped, tag = 'scoped memory for tpu_custom_call.1']
    #allocation5 [shape = 'u8[512]{0}', space=vmem, size = 0x400, scoped, tag = 'input window, operand 4, single buffered']
    #allocation6 [shape = 's32[1]{0}', space=sflag, size = 0x4, scoped, tag = 'scoped memory for tpu_custom_call.1']
    #allocation7 [shape = 'u8[32768]{0}', space=vmem, size = 0x8000, scoped, tag = 'input window, operand 5, single buffered']
    #allocation8 [shape = 'u8[512]{0}', space=vmem, size = 0x400, scoped, tag = 'input window, operand 6, single buffered']
    #allocation9 [shape = 's32[1]{0}', space=sflag, size = 0x4, scoped, tag = 'scoped memory for tpu_custom_call.1']
    #allocation10 [shape = 'u8[65536]{0}', space=vmem, size = 0x10000, scoped, tag = 'input window, operand 7, single buffered']
    #allocation11 [shape = 'u8[196608]{0}', space=vmem, size = 0x30000, scoped, tag = 'input window, operand 9, single buffered']
    #allocation12 [shape = 's32[1]{0}', space=sflag, size = 0x4, scoped, tag = 'scoped memory for tpu_custom_call.1']
    #allocation13 [shape = 'u8[65536]{0}', space=vmem, size = 0x10000, scoped, tag = 'input window, operand 11, single buffered']
    #allocation14 [shape = 'u8[65536]{0}', space=vmem, size = 0x10000, scoped, tag = 'input window, operand 13, single buffered']
    #allocation15 [shape = 's32[1]{0}', space=sflag, size = 0x4, scoped, tag = 'scoped memory for tpu_custom_call.1']
    #allocation16 [shape = 'u8[8192]{0}', space=vmem, size = 0x2000, scoped, tag = 'output window, operand 0, single buffered']
    %20 = vsyncpa [#allocation3], 0
    %21 = vsyncpa [#allocation6], 0
    %22 = vsyncpa [#allocation9], 0
    %23 = vsyncpa [#allocation12], 0
    %24 = vsyncpa [#allocation15], 0
    %25 = vsyncpa [#allocation4], 0
    // Predicated region
    $region2: #{tpu_custom_call.1} parent=1 // pred_check
      _
    $region3: #{tpu_custom_call.1} parent=1 // pred_check_branch
      %27 = sbr.rel (0) target = $region5
    $region4: #{tpu_custom_call.1} parent=1 // pred_region
      _
    $region5: #{tpu_custom_call.1} parent=1 // pred_fallthru
      _
    // Predicated region
    $region6: #{tpu_custom_call.1} parent=1 // pred_check
      _
    $region7: #{tpu_custom_call.1} parent=1 // pred_check_branch
      %29 = sbr.rel (0) target = $region9
    $region8: #{tpu_custom_call.1} parent=1 // pred_region
      _
    $region9: #{tpu_custom_call.1} parent=1 // pred_fallthru
      _
    // Predicated region
    $region10: #{tpu_custom_call.1} parent=1 // pred_check
      _
    $region11: #{tpu_custom_call.1} parent=1 // pred_check_branch
      %31 = sbr.rel (0) target = $region13
    $region12: #{tpu_custom_call.1} parent=1 // pred_region
      _
    $region13: #{tpu_custom_call.1} parent=1 // pred_fallthru
      _
    // Predicated region
    $region14: #{tpu_custom_call.1} parent=1 // pred_check
      _
    $region15: #{tpu_custom_call.1} parent=1 // pred_check_branch
      %33 = sbr.rel (0) target = $region17
    $region16: #{tpu_custom_call.1} parent=1 // pred_region
      %35 = vsyncadd [#allocation3], 0
      %s36 = sshll.u32 %s3, 4
      %s37 = int_to_ptr.hbm [resolvable:$true] %s36
      %s38 = sshll.u32 [#allocation2], 4
      %s39 = int_to_ptr.vmem [resolvable:$true] %s38
      %44 = dma.hbm_to_vmem [thread:$0]  %s37, 1024, %s39, [#allocation3], 64, 64, 4
    $region17: #{tpu_custom_call.1} parent=1 // pred_fallthru
      _
    // Predicated region
    $region18: #{tpu_custom_call.1} parent=1 // pred_check
      _
    $region19: #{tpu_custom_call.1} parent=1 // pred_check_branch
      %46 = sbr.rel (0) target = $region21
    $region20: #{tpu_custom_call.1} parent=1 // pred_region
      %48 = vsyncadd [#allocation6], 0
      %s50 = sshll.u32 %s4, 4
      %s51 = int_to_ptr.hbm [resolvable:$true] %s50
      %s52 = sshll.u32 [#allocation5], 4
      %s53 = int_to_ptr.vmem [resolvable:$true] %s52
      %55 = dma.hbm_to_vmem [thread:$0]  %s51, 16, %s53, [#allocation6]
    $region21: #{tpu_custom_call.1} parent=1 // pred_fallthru
      _
    // Predicated region
    $region22: #{tpu_custom_call.1} parent=1 // pred_check
      _
    $region23: #{tpu_custom_call.1} parent=1 // pred_check_branch
      %57 = sbr.rel (0) target = $region25
    $region24: #{tpu_custom_call.1} parent=1 // pred_region
      %59 = vsyncadd [#allocation6], 0
      %s60 = sshll.u32 %s5, 4
      %s61 = int_to_ptr.hbm [resolvable:$true] %s60
      %s62 = sshll.u32 [#allocation7], 4
      %s63 = int_to_ptr.vmem [resolvable:$true] %s62
      %68 = dma.hbm_to_vmem [thread:$0]  %s61, 1024, %s63, [#allocation6], 64, 64, 4
    $region25: #{tpu_custom_call.1} parent=1 // pred_fallthru
      _
    // Predicated region
    $region26: #{tpu_custom_call.1} parent=1 // pred_check
      _
    $region27: #{tpu_custom_call.1} parent=1 // pred_check_branch
      %70 = sbr.rel (0) target = $region29
    $region28: #{tpu_custom_call.1} parent=1 // pred_region
      %72 = vsyncadd [#allocation9], 0
      %s74 = sshll.u32 %s6, 4
      %s75 = int_to_ptr.hbm [resolvable:$true] %s74
      %s76 = sshll.u32 [#allocation8], 4
      %s77 = int_to_ptr.vmem [resolvable:$true] %s76
      %79 = dma.hbm_to_vmem [thread:$0]  %s75, 16, %s77, [#allocation9]
    $region29: #{tpu_custom_call.1} parent=1 // pred_fallthru
      _
    // Predicated region
    $region30: #{tpu_custom_call.1} parent=1 // pred_check
      _
    $region31: #{tpu_custom_call.1} parent=1 // pred_check_branch
      %81 = sbr.rel (0) target = $region33
    $region32: #{tpu_custom_call.1} parent=1 // pred_region
      %83 = vsyncadd [#allocation9], 0
      %s84 = sshll.u32 %s7, 4
      %s85 = int_to_ptr.hbm [resolvable:$true] %s84
      %s86 = sshll.u32 [#allocation10], 4
      %s87 = int_to_ptr.vmem [resolvable:$true] %s86
      %92 = dma.hbm_to_vmem [thread:$0]  %s85, 2048, %s87, [#allocation9], 128, 128, 8
    $region33: #{tpu_custom_call.1} parent=1 // pred_fallthru
      _
    // Predicated region
    $region34: #{tpu_custom_call.1} parent=1 // pred_check
      _
    $region35: #{tpu_custom_call.1} parent=1 // pred_check_branch
      %94 = sbr.rel (0) target = $region37
    $region36: #{tpu_custom_call.1} parent=1 // pred_region
      _
    $region37: #{tpu_custom_call.1} parent=1 // pred_fallthru
      _
    // Predicated region
    $region38: #{tpu_custom_call.1} parent=1 // pred_check
      _
    $region39: #{tpu_custom_call.1} parent=1 // pred_check_branch
      %96 = sbr.rel (0) target = $region41
    $region40: #{tpu_custom_call.1} parent=1 // pred_region
      %98 = vsyncadd [#allocation12], 0
      %s99 = sshll.u32 %s9, 4
      %s100 = int_to_ptr.hbm [resolvable:$true] %s99
      %s101 = sshll.u32 [#allocation11], 4
      %s102 = int_to_ptr.vmem [resolvable:$true] %s101
      %107 = dma.hbm_to_vmem [thread:$0]  %s100, 6144, %s102, [#allocation12], 192, 192, 12
    $region41: #{tpu_custom_call.1} parent=1 // pred_fallthru
      _
    // Predicated region
    $region42: #{tpu_custom_call.1} parent=1 // pred_check
      _
    $region43: #{tpu_custom_call.1} parent=1 // pred_check_branch
      %109 = sbr.rel (0) target = $region45
    $region44: #{tpu_custom_call.1} parent=1 // pred_region
      _
    $region45: #{tpu_custom_call.1} parent=1 // pred_fallthru
      _
    // Predicated region
    $region46: #{tpu_custom_call.1} parent=1 // pred_check
      _
    $region47: #{tpu_custom_call.1} parent=1 // pred_check_branch
      %111 = sbr.rel (0) target = $region49
    $region48: #{tpu_custom_call.1} parent=1 // pred_region
      %113 = vsyncadd [#allocation12], 0
      %s114 = sshll.u32 %s11, 4
      %s115 = int_to_ptr.hbm [resolvable:$true] %s114
      %s116 = sshll.u32 [#allocation13], 4
      %s117 = int_to_ptr.vmem [resolvable:$true] %s116
      %122 = dma.hbm_to_vmem [thread:$0]  %s115, 2048, %s117, [#allocation12], 128, 128, 8
    $region49: #{tpu_custom_call.1} parent=1 // pred_fallthru
      _
    // Predicated region
    $region50: #{tpu_custom_call.1} parent=1 // pred_check
      _
    $region51: #{tpu_custom_call.1} parent=1 // pred_check_branch
      %124 = sbr.rel (0) target = $region53
    $region52: #{tpu_custom_call.1} parent=1 // pred_region
      _
    $region53: #{tpu_custom_call.1} parent=1 // pred_fallthru
      _
    // Predicated region
    $region54: #{tpu_custom_call.1} parent=1 // pred_check
      _
    $region55: #{tpu_custom_call.1} parent=1 // pred_check_branch
      %126 = sbr.rel (0) target = $region57
    $region56: #{tpu_custom_call.1} parent=1 // pred_region
      %128 = vsyncadd [#allocation15], 0
      %s129 = sshll.u32 %s13, 4
      %s130 = int_to_ptr.hbm [resolvable:$true] %s129
      %s131 = sshll.u32 [#allocation14], 4
      %s132 = int_to_ptr.vmem [resolvable:$true] %s131
      %137 = dma.hbm_to_vmem [thread:$0]  %s130, 2048, %s132, [#allocation15], 64, 64, 4
    $region57: #{tpu_custom_call.1} parent=1 // pred_fallthru
      _
    // Predicated region
    $region58: #{tpu_custom_call.1} parent=1 // pred_check
      _
    $region59: #{tpu_custom_call.1} parent=1 // pred_check_branch
      %139 = sbr.rel (0) target = $region61
    $region60: #{tpu_custom_call.1} parent=1 // pred_region
      _
    $region61: #{tpu_custom_call.1} parent=1 // pred_fallthru
      _
    // Predicated region
    $region62: #{tpu_custom_call.1} parent=1 // pred_check
      _
    $region63: #{tpu_custom_call.1} parent=1 // pred_check_branch
      %141 = sbr.rel (0) target = $region65
    $region64: #{tpu_custom_call.1} parent=1 // pred_region
      %143 = dma.done [#allocation3], 1024
    $region65: #{tpu_custom_call.1} parent=1 // pred_fallthru
      _
    // Predicated region
    $region66: #{tpu_custom_call.1} parent=1 // pred_check
      _
    $region67: #{tpu_custom_call.1} parent=1 // pred_check_branch
      %145 = sbr.rel (0) target = $region69
    $region68: #{tpu_custom_call.1} parent=1 // pred_region
      %147 = dma.done [#allocation6], 16
    $region69: #{tpu_custom_call.1} parent=1 // pred_fallthru
      _
    // Predicated region
    $region70: #{tpu_custom_call.1} parent=1 // pred_check
      _
    $region71: #{tpu_custom_call.1} parent=1 // pred_check_branch
      %149 = sbr.rel (0) target = $region73
    $region72: #{tpu_custom_call.1} parent=1 // pred_region
      %151 = dma.done [#allocation6], 1024
    $region73: #{tpu_custom_call.1} parent=1 // pred_fallthru
      _
    // Predicated region
    $region74: #{tpu_custom_call.1} parent=1 // pred_check
      _
    $region75: #{tpu_custom_call.1} parent=1 // pred_check_branch
      %153 = sbr.rel (0) target = $region77
    $region76: #{tpu_custom_call.1} parent=1 // pred_region
      %155 = dma.done [#allocation9], 16
    $region77: #{tpu_custom_call.1} parent=1 // pred_fallthru
      _
    // Predicated region
    $region78: #{tpu_custom_call.1} parent=1 // pred_check
      _
    $region79: #{tpu_custom_call.1} parent=1 // pred_check_branch
      %157 = sbr.rel (0) target = $region81
    $region80: #{tpu_custom_call.1} parent=1 // pred_region
      %159 = dma.done [#allocation9], 2048
    $region81: #{tpu_custom_call.1} parent=1 // pred_fallthru
      _
    // Predicated region
    $region82: #{tpu_custom_call.1} parent=1 // pred_check
      _
    $region83: #{tpu_custom_call.1} parent=1 // pred_check_branch
      %161 = sbr.rel (0) target = $region85
    $region84: #{tpu_custom_call.1} parent=1 // pred_region
      %163 = dma.done [#allocation12], 6144
    $region85: #{tpu_custom_call.1} parent=1 // pred_fallthru
      _
    // Predicated region
    $region86: #{tpu_custom_call.1} parent=1 // pred_check
      _
    $region87: #{tpu_custom_call.1} parent=1 // pred_check_branch
      %165 = sbr.rel (0) target = $region89
    $region88: #{tpu_custom_call.1} parent=1 // pred_region
      %167 = dma.done [#allocation12], 2048
    $region89: #{tpu_custom_call.1} parent=1 // pred_fallthru
      _
    // Predicated region
    $region90: #{tpu_custom_call.1} parent=1 // pred_check
      _
    $region91: #{tpu_custom_call.1} parent=1 // pred_check_branch
      %169 = sbr.rel (0) target = $region93
    $region92: #{tpu_custom_call.1} parent=1 // pred_region
      %171 = dma.done [#allocation15], 2048
    $region93: #{tpu_custom_call.1} parent=1 // pred_fallthru
      _
    %v172 = vld [vmem:[%s0] sm:$0xf]
    %v173 = vunpack.c.l.bf16 %v172
    %v174 = vld [vmem:[%s1] sm:$0xf]
    %v175 = vunpack.c.l.bf16 %v174
    %v176 = vlaneseq
    %v177 = vand.u32 %v176, 127
    %v178 = vld [vmem:[%s2] sm:$0xff]
    %v179 = vadd.s32 %v178, 32
    %180 = vset.pattern.permute.xlu0 0
    %181 = vperm.xlu0 %180, %v179
    %v182 = vpop.permute.xlu0 %181
    %vm183 = vcmp.eq.s32.totalorder %v177, %v182
    %v184 = vsel %vm183, 1, 0
    %v185 = vcvt.s32.f32 %v184
    %v186 = vadd.f32 %v173, %v185
    %v187 = vadd.f32 %v173, %v175
    %v188 = vpack.c.bf16 %v186, %v186
    %v189 = vld [vmem:[#allocation2] sm:$0xf]
    %v190 = vld [vmem:[#allocation2 + $0x4] sm:$0xf]
    %v191 = vld [vmem:[#allocation2 + $0x8] sm:$0xf]
    %v192 = vld [vmem:[#allocation2 + $0xc] sm:$0xf]
    %v193 = vld [vmem:[#allocation2 + $0x10] sm:$0xf]
    %v194 = vld [vmem:[#allocation2 + $0x14] sm:$0xf]
    %v195 = vld [vmem:[#allocation2 + $0x18] sm:$0xf]
    %v196 = vld [vmem:[#allocation2 + $0x1c] sm:$0xf]
    %v197 = vld [vmem:[#allocation2 + $0x20] sm:$0xf]
    %v198 = vld [vmem:[#allocation2 + $0x24] sm:$0xf]
    %v199 = vld [vmem:[#allocation2 + $0x28] sm:$0xf]
    %v200 = vld [vmem:[#allocation2 + $0x2c] sm:$0xf]
    %v201 = vld [vmem:[#allocation2 + $0x30] sm:$0xf]
    %v202 = vld [vmem:[#allocation2 + $0x34] sm:$0xf]
    %v203 = vld [vmem:[#allocation2 + $0x38] sm:$0xf]
    %v204 = vld [vmem:[#allocation2 + $0x3c] sm:$0xf]
    %v205 = vld [vmem:[#allocation5] sm:$0x1]
    %v207 = vperm.slane %v205, 0
    %v225 = vunpack.c.l.b16 %v189
    %v226 = vunpack.c.l.b16 %v190
    %v227 = vunpack.c.l.b16 %v191
    %v228 = vunpack.c.l.b16 %v192
    %v229 = vunpack.c.l.b16 %v193
    %v230 = vunpack.c.l.b16 %v194
    %v231 = vunpack.c.l.b16 %v195
    %v232 = vunpack.c.l.b16 %v196
    %v233 = vunpack.c.l.b16 %v197
    %v234 = vunpack.c.l.b16 %v198
    %v235 = vunpack.c.l.b16 %v199
    %v236 = vunpack.c.l.b16 %v200
    %v237 = vunpack.c.l.b16 %v201
    %v238 = vunpack.c.l.b16 %v202
    %v239 = vunpack.c.l.b16 %v203
    %v240 = vunpack.c.l.b16 %v204
    %v241 = vpack.c.b16 %v226, %v225
    %v242 = vpack.c.b16 %v228, %v227
    %v243 = vpack.c.b16 %v230, %v229
    %v244 = vpack.c.b16 %v232, %v231
    %v245 = vpack.c.b16 %v234, %v233
    %v246 = vpack.c.b16 %v236, %v235
    %v247 = vpack.c.b16 %v238, %v237
    %v248 = vpack.c.b16 %v240, %v239
    %257 = vmatpush.bf16.msra.mxu0 %v248
    %258 = vmatpush.bf16.msra.mxu0 %v247
    %259 = vmatpush.bf16.msra.mxu0 %v246
    %260 = vmatpush.bf16.msra.mxu0 %v245
    %261 = vmatpush.bf16.msra.mxu0 %v244
    %262 = vmatpush.bf16.msra.mxu0 %v243
    %263 = vmatpush.bf16.msra.mxu0 %v242
    %264 = vmatpush.bf16.msra.mxu0 %v241
    %265 = vmatmul.bf16.gmra.mxu0 %v188
    %v266 = vpop.f32.mrf.mxu0
    %v267 = vadd.f32 %v207, %v266
    %v268 = vpop.f32.mrf.mxu0
    %269 = vdwg.mxu0
    %vm270 = vcmp.lt.s32.totalorder %v177, 40
    %v271 = vsel %vm270, %v267, -1e+30
    %272 = vmax.xlane.f32.xlu0 %v271
    %v273 = vpop.xlane.xlu0 %272
    %v274 = vsub.f32 %v271, %v273
    %v275 = vmul.f32 %v274, 1.442695
    %v276 = vpow.pop %v275
    %277 = vadd.xlane.f32.xlu0 %v276
    %v278 = vpop.xlane.xlu0 %277
    %v279 = vrcp.pop %v278
    %v280 = vmul.f32 %v276, %v279
    %v281 = vmul.f32 %v186, %v280
    %v282 = vpack.c.bf16 %v281, %v281
    %v283 = vld [vmem:[#allocation10] sm:$0xff]
    %v284 = vld [vmem:[#allocation10 + $0x8] sm:$0xff]
    %v285 = vld [vmem:[#allocation10 + $0x10] sm:$0xff]
    %v286 = vld [vmem:[#allocation10 + $0x18] sm:$0xff]
    %v287 = vld [vmem:[#allocation10 + $0x20] sm:$0xff]
    %v288 = vld [vmem:[#allocation10 + $0x28] sm:$0xff]
    %v289 = vld [vmem:[#allocation10 + $0x30] sm:$0xff]
    %v290 = vld [vmem:[#allocation10 + $0x38] sm:$0xff]
    %v291 = vld [vmem:[#allocation10 + $0x40] sm:$0xff]
    %v292 = vld [vmem:[#allocation10 + $0x48] sm:$0xff]
    %v293 = vld [vmem:[#allocation10 + $0x50] sm:$0xff]
    %v294 = vld [vmem:[#allocation10 + $0x58] sm:$0xff]
    %v295 = vld [vmem:[#allocation10 + $0x60] sm:$0xff]
    %v296 = vld [vmem:[#allocation10 + $0x68] sm:$0xff]
    %v297 = vld [vmem:[#allocation10 + $0x70] sm:$0xff]
    %v298 = vld [vmem:[#allocation10 + $0x78] sm:$0xff]
    %v299 = vld [vmem:[%s8] sm:$0x3]
    %v301 = vperm.slane %v299, 0
    %v302 = vperm.slane %v299, 1
    %v321 = vunpack.c.l.b16 %v283
    %v322 = vunpack.c.h.b16 %v283
    %v323 = vunpack.c.l.b16 %v284
    %v324 = vunpack.c.h.b16 %v284
    %v325 = vunpack.c.l.b16 %v285
    %v326 = vunpack.c.h.b16 %v285
    %v327 = vunpack.c.l.b16 %v286
    %v328 = vunpack.c.h.b16 %v286
    %v329 = vunpack.c.l.b16 %v287
    %v330 = vunpack.c.h.b16 %v287
    %v331 = vunpack.c.l.b16 %v288
    %v332 = vunpack.c.h.b16 %v288
    %v333 = vunpack.c.l.b16 %v289
    %v334 = vunpack.c.h.b16 %v289
    %v335 = vunpack.c.l.b16 %v290
    %v336 = vunpack.c.h.b16 %v290
    %v337 = vunpack.c.l.b16 %v291
    %v338 = vunpack.c.h.b16 %v291
    %v339 = vunpack.c.l.b16 %v292
    %v340 = vunpack.c.h.b16 %v292
    %v341 = vunpack.c.l.b16 %v293
    %v342 = vunpack.c.h.b16 %v293
    %v343 = vunpack.c.l.b16 %v294
    %v344 = vunpack.c.h.b16 %v294
    %v345 = vunpack.c.l.b16 %v295
    %v346 = vunpack.c.h.b16 %v295
    %v347 = vunpack.c.l.b16 %v296
    %v348 = vunpack.c.h.b16 %v296
    %v349 = vunpack.c.l.b16 %v297
    %v350 = vunpack.c.h.b16 %v297
    %v351 = vunpack.c.l.b16 %v298
    %v352 = vunpack.c.h.b16 %v298
    %v353 = vpack.c.b16 %v323, %v321
    %v354 = vpack.c.b16 %v324, %v322
    %v355 = vpack.c.b16 %v327, %v325
    %v356 = vpack.c.b16 %v328, %v326
    %v357 = vpack.c.b16 %v331, %v329
    %v358 = vpack.c.b16 %v332, %v330
    %v359 = vpack.c.b16 %v335, %v333
    %v360 = vpack.c.b16 %v336, %v334
    %v361 = vpack.c.b16 %v339, %v337
    %v362 = vpack.c.b16 %v340, %v338
    %v363 = vpack.c.b16 %v343, %v341
    %v364 = vpack.c.b16 %v344, %v342
    %v365 = vpack.c.b16 %v347, %v345
    %v366 = vpack.c.b16 %v348, %v346
    %v367 = vpack.c.b16 %v351, %v349
    %v368 = vpack.c.b16 %v352, %v350
    %385 = vmatpush.bf16.msra.mxu0 %v367
    %386 = vmatpush.bf16.msra.mxu0 %v365
    %387 = vmatpush.bf16.msra.mxu0 %v363
    %388 = vmatpush.bf16.msra.mxu0 %v361
    %389 = vmatpush.bf16.msra.mxu0 %v359
    %390 = vmatpush.bf16.msra.mxu0 %v357
    %391 = vmatpush.bf16.msra.mxu0 %v355
    %392 = vmatpush.bf16.msra.mxu0 %v353
    %393 = vmatmul.bf16.gmra.mxu0 %v282
    %v394 = vpop.f32.mrf.mxu0
    %v395 = vadd.f32 %v301, %v394
    %v396 = vpop.f32.mrf.mxu0
    %397 = vdwg.mxu0
    %398 = vmatpush.bf16.msra.mxu0 %v368
    %399 = vmatpush.bf16.msra.mxu0 %v366
    %400 = vmatpush.bf16.msra.mxu0 %v364
    %401 = vmatpush.bf16.msra.mxu0 %v362
    %402 = vmatpush.bf16.msra.mxu0 %v360
    %403 = vmatpush.bf16.msra.mxu0 %v358
    %404 = vmatpush.bf16.msra.mxu0 %v356
    %405 = vmatpush.bf16.msra.mxu0 %v354
    %406 = vmatmul.bf16.gmra.mxu0 %v282
    %v407 = vpop.f32.mrf.mxu0
    %v408 = vadd.f32 %v302, %v407
    %v409 = vpop.f32.mrf.mxu0
    %410 = vdwg.mxu0
    %v411 = vpack.c.bf16 %v395, %v395
    %v412 = vpack.c.bf16 %v408, %v408
    %v413 = vld [vmem:[#allocation11] sm:$0xff]
    %v414 = vld [vmem:[#allocation11 + $0x8] sm:$0xf]
    %v415 = vld [vmem:[#allocation11 + $0xc] sm:$0xff]
    %v416 = vld [vmem:[#allocation11 + $0x14] sm:$0xf]
    %v417 = vld [vmem:[#allocation11 + $0x18] sm:$0xff]
    %v418 = vld [vmem:[#allocation11 + $0x20] sm:$0xf]
    %v419 = vld [vmem:[#allocation11 + $0x24] sm:$0xff]
    %v420 = vld [vmem:[#allocation11 + $0x2c] sm:$0xf]
    %v421 = vld [vmem:[#allocation11 + $0x30] sm:$0xff]
    %v422 = vld [vmem:[#allocation11 + $0x38] sm:$0xf]
    %v423 = vld [vmem:[#allocation11 + $0x3c] sm:$0xff]
    %v424 = vld [vmem:[#allocation11 + $0x44] sm:$0xf]
    %v425 = vld [vmem:[#allocation11 + $0x48] sm:$0xff]
    %v426 = vld [vmem:[#allocation11 + $0x50] sm:$0xf]
    %v427 = vld [vmem:[#allocation11 + $0x54] sm:$0xff]
    %v428 = vld [vmem:[#allocation11 + $0x5c] sm:$0xf]
    %v429 = vld [vmem:[#allocation11 + $0x60] sm:$0xff]
    %v430 = vld [vmem:[#allocation11 + $0x68] sm:$0xf]
    %v431 = vld [vmem:[#allocation11 + $0x6c] sm:$0xff]
    %v432 = vld [vmem:[#allocation11 + $0x74] sm:$0xf]
    %v433 = vld [vmem:[#allocation11 + $0x78] sm:$0xff]
    %v434 = vld [vmem:[#allocation11 + $0x80] sm:$0xf]
    %v435 = vld [vmem:[#allocation11 + $0x84] sm:$0xff]
    %v436 = vld [vmem:[#allocation11 + $0x8c] sm:$0xf]
    %v437 = vld [vmem:[#allocation11 + $0x90] sm:$0xff]
    %v438 = vld [vmem:[#allocation11 + $0x98] sm:$0xf]
    %v439 = vld [vmem:[#allocation11 + $0x9c] sm:$0xff]
    %v440 = vld [vmem:[#allocation11 + $0xa4] sm:$0xf]
    %v441 = vld [vmem:[#allocation11 + $0xa8] sm:$0xff]
    %v442 = vld [vmem:[#allocation11 + $0xb0] sm:$0xf]
    %v443 = vld [vmem:[#allocation11 + $0xb4] sm:$0xff]
    %v444 = vld [vmem:[#allocation11 + $0xbc] sm:$0xf]
    %v445 = vld [vmem:[#allocation11 + $0xc0] sm:$0xff]
    %v446 = vld [vmem:[#allocation11 + $0xc8] sm:$0xf]
    %v447 = vld [vmem:[#allocation11 + $0xcc] sm:$0xff]
    %v448 = vld [vmem:[#allocation11 + $0xd4] sm:$0xf]
    %v449 = vld [vmem:[#allocation11 + $0xd8] sm:$0xff]
    %v450 = vld [vmem:[#allocation11 + $0xe0] sm:$0xf]
    %v451 = vld [vmem:[#allocation11 + $0xe4] sm:$0xff]
    %v452 = vld [vmem:[#allocation11 + $0xec] sm:$0xf]
    %v453 = vld [vmem:[#allocation11 + $0xf0] sm:$0xff]
    %v454 = vld [vmem:[#allocation11 + $0xf8] sm:$0xf]
    %v455 = vld [vmem:[#allocation11 + $0xfc] sm:$0xff]
    %v456 = vld [vmem:[#allocation11 + $0x104] sm:$0xf]
    %v457 = vld [vmem:[#allocation11 + $0x108] sm:$0xff]
    %v458 = vld [vmem:[#allocation11 + $0x110] sm:$0xf]
    %v459 = vld [vmem:[#allocation11 + $0x114] sm:$0xff]
    %v460 = vld [vmem:[#allocation11 + $0x11c] sm:$0xf]
    %v461 = vld [vmem:[#allocation11 + $0x120] sm:$0xff]
    %v462 = vld [vmem:[#allocation11 + $0x128] sm:$0xf]
    %v463 = vld [vmem:[#allocation11 + $0x12c] sm:$0xff]
    %v464 = vld [vmem:[#allocation11 + $0x134] sm:$0xf]
    %v465 = vld [vmem:[#allocation11 + $0x138] sm:$0xff]
    %v466 = vld [vmem:[#allocation11 + $0x140] sm:$0xf]
    %v467 = vld [vmem:[#allocation11 + $0x144] sm:$0xff]
    %v468 = vld [vmem:[#allocation11 + $0x14c] sm:$0xf]
    %v469 = vld [vmem:[#allocation11 + $0x150] sm:$0xff]
    %v470 = vld [vmem:[#allocation11 + $0x158] sm:$0xf]
    %v471 = vld [vmem:[#allocation11 + $0x15c] sm:$0xff]
    %v472 = vld [vmem:[#allocation11 + $0x164] sm:$0xf]
    %v473 = vld [vmem:[#allocation11 + $0x168] sm:$0xff]
    %v474 = vld [vmem:[#allocation11 + $0x170] sm:$0xf]
    %v475 = vld [vmem:[#allocation11 + $0x174] sm:$0xff]
    %v476 = vld [vmem:[#allocation11 + $0x17c] sm:$0xf]
    %v477 = vld [vmem:[%s10] sm:$0x7]
    %v479 = vperm.slane %v477, 0
    %v480 = vperm.slane %v477, 1
    %v481 = vperm.slane %v477, 2
    %v549 = vunpack.c.l.b16 %v413
    %v550 = vunpack.c.h.b16 %v413
    %v551 = vunpack.c.l.b16 %v414
    %v552 = vunpack.c.l.b16 %v415
    %v553 = vunpack.c.h.b16 %v415
    %v554 = vunpack.c.l.b16 %v416
    %v555 = vunpack.c.l.b16 %v417
    %v556 = vunpack.c.h.b16 %v417
    %v557 = vunpack.c.l.b16 %v418
    %v558 = vunpack.c.l.b16 %v419
    %v559 = vunpack.c.h.b16 %v419
    %v560 = vunpack.c.l.b16 %v420
    %v561 = vunpack.c.l.b16 %v421
    %v562 = vunpack.c.h.b16 %v421
    %v563 = vunpack.c.l.b16 %v422
    %v564 = vunpack.c.l.b16 %v423
    %v565 = vunpack.c.h.b16 %v423
    %v566 = vunpack.c.l.b16 %v424
    %v567 = vunpack.c.l.b16 %v425
    %v568 = vunpack.c.h.b16 %v425
    %v569 = vunpack.c.l.b16 %v426
    %v570 = vunpack.c.l.b16 %v427
    %v571 = vunpack.c.h.b16 %v427
    %v572 = vunpack.c.l.b16 %v428
    %v573 = vunpack.c.l.b16 %v429
    %v574 = vunpack.c.h.b16 %v429
    %v575 = vunpack.c.l.b16 %v430
    %v576 = vunpack.c.l.b16 %v431
    %v577 = vunpack.c.h.b16 %v431
    %v578 = vunpack.c.l.b16 %v432
    %v579 = vunpack.c.l.b16 %v433
    %v580 = vunpack.c.h.b16 %v433
    %v581 = vunpack.c.l.b16 %v434
    %v582 = vunpack.c.l.b16 %v435
    %v583 = vunpack.c.h.b16 %v435
    %v584 = vunpack.c.l.b16 %v436
    %v585 = vunpack.c.l.b16 %v437
    %v586 = vunpack.c.h.b16 %v437
    %v587 = vunpack.c.l.b16 %v438
    %v588 = vunpack.c.l.b16 %v439
    %v589 = vunpack.c.h.b16 %v439
    %v590 = vunpack.c.l.b16 %v440
    %v591 = vunpack.c.l.b16 %v441
    %v592 = vunpack.c.h.b16 %v441
    %v593 = vunpack.c.l.b16 %v442
    %v594 = vunpack.c.l.b16 %v443
    %v595 = vunpack.c.h.b16 %v443
    %v596 = vunpack.c.l.b16 %v444
    %v597 = vunpack.c.l.b16 %v445
    %v598 = vunpack.c.h.b16 %v445
    %v599 = vunpack.c.l.b16 %v446
    %v600 = vunpack.c.l.b16 %v447
    %v601 = vunpack.c.h.b16 %v447
    %v602 = vunpack.c.l.b16 %v448
    %v603 = vunpack.c.l.b16 %v449
    %v604 = vunpack.c.h.b16 %v449
    %v605 = vunpack.c.l.b16 %v450
    %v606 = vunpack.c.l.b16 %v451
    %v607 = vunpack.c.h.b16 %v451
    %v608 = vunpack.c.l.b16 %v452
    %v609 = vunpack.c.l.b16 %v453
    %v610 = vunpack.c.h.b16 %v453
    %v611 = vunpack.c.l.b16 %v454
    %v612 = vunpack.c.l.b16 %v455
    %v613 = vunpack.c.h.b16 %v455
    %v614 = vunpack.c.l.b16 %v456
    %v615 = vunpack.c.l.b16 %v457
    %v616 = vunpack.c.h.b16 %v457
    %v617 = vunpack.c.l.b16 %v458
    %v618 = vunpack.c.l.b16 %v459
    %v619 = vunpack.c.h.b16 %v459
    %v620 = vunpack.c.l.b16 %v460
    %v621 = vunpack.c.l.b16 %v461
    %v622 = vunpack.c.h.b16 %v461
    %v623 = vunpack.c.l.b16 %v462
    %v624 = vunpack.c.l.b16 %v463
    %v625 = vunpack.c.h.b16 %v463
    %v626 = vunpack.c.l.b16 %v464
    %v627 = vunpack.c.l.b16 %v465
    %v628 = vunpack.c.h.b16 %v465
    %v629 = vunpack.c.l.b16 %v466
    %v630 = vunpack.c.l.b16 %v467
    %v631 = vunpack.c.h.b16 %v467
    %v632 = vunpack.c.l.b16 %v468
    %v633 = vunpack.c.l.b16 %v469
    %v634 = vunpack.c.h.b16 %v469
    %v635 = vunpack.c.l.b16 %v470
    %v636 = vunpack.c.l.b16 %v471
    %v637 = vunpack.c.h.b16 %v471
    %v638 = vunpack.c.l.b16 %v472
    %v639 = vunpack.c.l.b16 %v473
    %v640 = vunpack.c.h.b16 %v473
    %v641 = vunpack.c.l.b16 %v474
    %v642 = vunpack.c.l.b16 %v475
    %v643 = vunpack.c.h.b16 %v475
    %v644 = vunpack.c.l.b16 %v476
    %v645 = vpack.c.b16 %v552, %v549
    %v646 = vpack.c.b16 %v553, %v550
    %v647 = vpack.c.b16 %v554, %v551
    %v648 = vpack.c.b16 %v558, %v555
    %v649 = vpack.c.b16 %v559, %v556
    %v650 = vpack.c.b16 %v560, %v557
    %v651 = vpack.c.b16 %v564, %v561
    %v652 = vpack.c.b16 %v565, %v562
    %v653 = vpack.c.b16 %v566, %v563
    %v654 = vpack.c.b16 %v570, %v567
    %v655 = vpack.c.b16 %v571, %v568
    %v656 = vpack.c.b16 %v572, %v569
    %v657 = vpack.c.b16 %v576, %v573
    %v658 = vpack.c.b16 %v577, %v574
    %v659 = vpack.c.b16 %v578, %v575
    %v660 = vpack.c.b16 %v582, %v579
    %v661 = vpack.c.b16 %v583, %v580
    %v662 = vpack.c.b16 %v584, %v581
    %v663 = vpack.c.b16 %v588, %v585
    %v664 = vpack.c.b16 %v589, %v586
    %v665 = vpack.c.b16 %v590, %v587
    %v666 = vpack.c.b16 %v594, %v591
    %v667 = vpack.c.b16 %v595, %v592
    %v668 = vpack.c.b16 %v596, %v593
    %v669 = vpack.c.b16 %v600, %v597
    %v670 = vpack.c.b16 %v601, %v598
    %v671 = vpack.c.b16 %v602, %v599
    %v672 = vpack.c.b16 %v606, %v603
    %v673 = vpack.c.b16 %v607, %v604
    %v674 = vpack.c.b16 %v608, %v605
    %v675 = vpack.c.b16 %v612, %v609
    %v676 = vpack.c.b16 %v613, %v610
    %v677 = vpack.c.b16 %v614, %v611
    %v678 = vpack.c.b16 %v618, %v615
    %v679 = vpack.c.b16 %v619, %v616
    %v680 = vpack.c.b16 %v620, %v617
    %v681 = vpack.c.b16 %v624, %v621
    %v682 = vpack.c.b16 %v625, %v622
    %v683 = vpack.c.b16 %v626, %v623
    %v684 = vpack.c.b16 %v630, %v627
    %v685 = vpack.c.b16 %v631, %v628
    %v686 = vpack.c.b16 %v632, %v629
    %v687 = vpack.c.b16 %v636, %v633
    %v688 = vpack.c.b16 %v637, %v634
    %v689 = vpack.c.b16 %v638, %v635
    %v690 = vpack.c.b16 %v642, %v639
    %v691 = vpack.c.b16 %v643, %v640
    %v692 = vpack.c.b16 %v644, %v641
    %741 = vmatpush.bf16.msra.mxu0 %v666
    %742 = vmatpush.bf16.msra.mxu0 %v663
    %743 = vmatpush.bf16.msra.mxu0 %v660
    %744 = vmatpush.bf16.msra.mxu0 %v657
    %745 = vmatpush.bf16.msra.mxu0 %v654
    %746 = vmatpush.bf16.msra.mxu0 %v651
    %747 = vmatpush.bf16.msra.mxu0 %v648
    %748 = vmatpush.bf16.msra.mxu0 %v645
    %749 = vmatmul.bf16.gmra.mxu0 %v411
    %v750 = vpop.f32.mrf.mxu0
    %v751 = vadd.f32 %v479, %v750
    %v752 = vpop.f32.mrf.mxu0
    %753 = vdwg.mxu0
    %754 = vmatpush.bf16.msra.mxu0 %v690
    %755 = vmatpush.bf16.msra.mxu0 %v687
    %756 = vmatpush.bf16.msra.mxu0 %v684
    %757 = vmatpush.bf16.msra.mxu0 %v681
    %758 = vmatpush.bf16.msra.mxu0 %v678
    %759 = vmatpush.bf16.msra.mxu0 %v675
    %760 = vmatpush.bf16.msra.mxu0 %v672
    %761 = vmatpush.bf16.msra.mxu0 %v669
    %762 = vmatmul.bf16.gmra.mxu0 %v412
    %v763 = vpop.f32.mrf.mxu0
    %v764 = vadd.f32 %v751, %v763
    %v765 = vpop.f32.mrf.mxu0
    %766 = vdwg.mxu0
    %767 = vmatpush.bf16.msra.mxu0 %v667
    %768 = vmatpush.bf16.msra.mxu0 %v664
    %769 = vmatpush.bf16.msra.mxu0 %v661
    %770 = vmatpush.bf16.msra.mxu0 %v658
    %771 = vmatpush.bf16.msra.mxu0 %v655
    %772 = vmatpush.bf16.msra.mxu0 %v652
    %773 = vmatpush.bf16.msra.mxu0 %v649
    %774 = vmatpush.bf16.msra.mxu0 %v646
    %775 = vmatmul.bf16.gmra.mxu0 %v411
    %v776 = vpop.f32.mrf.mxu0
    %v777 = vadd.f32 %v480, %v776
    %v778 = vpop.f32.mrf.mxu0
    %779 = vdwg.mxu0
    %780 = vmatpush.bf16.msra.mxu0 %v691
    %781 = vmatpush.bf16.msra.mxu0 %v688
    %782 = vmatpush.bf16.msra.mxu0 %v685
    %783 = vmatpush.bf16.msra.mxu0 %v682
    %784 = vmatpush.bf16.msra.mxu0 %v679
    %785 = vmatpush.bf16.msra.mxu0 %v676
    %786 = vmatpush.bf16.msra.mxu0 %v673
    %787 = vmatpush.bf16.msra.mxu0 %v670
    %788 = vmatmul.bf16.gmra.mxu0 %v412
    %v789 = vpop.f32.mrf.mxu0
    %v790 = vadd.f32 %v777, %v789
    %v791 = vpop.f32.mrf.mxu0
    %792 = vdwg.mxu0
    %793 = vmatpush.bf16.msra.mxu0 %v668
    %794 = vmatpush.bf16.msra.mxu0 %v665
    %795 = vmatpush.bf16.msra.mxu0 %v662
    %796 = vmatpush.bf16.msra.mxu0 %v659
    %797 = vmatpush.bf16.msra.mxu0 %v656
    %798 = vmatpush.bf16.msra.mxu0 %v653
    %799 = vmatpush.bf16.msra.mxu0 %v650
    %800 = vmatpush.bf16.msra.mxu0 %v647
    %801 = vmatmul.bf16.gmra.mxu0 %v411
    %v802 = vpop.f32.mrf.mxu0
    %v803 = vadd.f32 %v481, %v802
    %v804 = vpop.f32.mrf.mxu0
    %805 = vdwg.mxu0
    %806 = vmatpush.bf16.msra.mxu0 %v692
    %807 = vmatpush.bf16.msra.mxu0 %v689
    %808 = vmatpush.bf16.msra.mxu0 %v686
    %809 = vmatpush.bf16.msra.mxu0 %v683
    %810 = vmatpush.bf16.msra.mxu0 %v680
    %811 = vmatpush.bf16.msra.mxu0 %v677
    %812 = vmatpush.bf16.msra.mxu0 %v674
    %813 = vmatpush.bf16.msra.mxu0 %v671
    %814 = vmatmul.bf16.gmra.mxu0 %v412
    %v815 = vpop.f32.mrf.mxu0
    %v816 = vadd.f32 %v803, %v815
    %v817 = vpop.f32.mrf.mxu0
    %818 = vdwg.mxu0
    %v819 = vpack.c.bf16 %v187, %v187
    %v820 = vld [vmem:[#allocation7] sm:$0xf]
    %v821 = vld [vmem:[#allocation7 + $0x4] sm:$0xf]
    %v822 = vld [vmem:[#allocation7 + $0x8] sm:$0xf]
    %v823 = vld [vmem:[#allocation7 + $0xc] sm:$0xf]
    %v824 = vld [vmem:[#allocation7 + $0x10] sm:$0xf]
    %v825 = vld [vmem:[#allocation7 + $0x14] sm:$0xf]
    %v826 = vld [vmem:[#allocation7 + $0x18] sm:$0xf]
    %v827 = vld [vmem:[#allocation7 + $0x1c] sm:$0xf]
    %v828 = vld [vmem:[#allocation7 + $0x20] sm:$0xf]
    %v829 = vld [vmem:[#allocation7 + $0x24] sm:$0xf]
    %v830 = vld [vmem:[#allocation7 + $0x28] sm:$0xf]
    %v831 = vld [vmem:[#allocation7 + $0x2c] sm:$0xf]
    %v832 = vld [vmem:[#allocation7 + $0x30] sm:$0xf]
    %v833 = vld [vmem:[#allocation7 + $0x34] sm:$0xf]
    %v834 = vld [vmem:[#allocation7 + $0x38] sm:$0xf]
    %v835 = vld [vmem:[#allocation7 + $0x3c] sm:$0xf]
    %v836 = vld [vmem:[#allocation8] sm:$0x1]
    %v838 = vperm.slane %v836, 0
    %v856 = vunpack.c.l.b16 %v820
    %v857 = vunpack.c.l.b16 %v821
    %v858 = vunpack.c.l.b16 %v822
    %v859 = vunpack.c.l.b16 %v823
    %v860 = vunpack.c.l.b16 %v824
    %v861 = vunpack.c.l.b16 %v825
    %v862 = vunpack.c.l.b16 %v826
    %v863 = vunpack.c.l.b16 %v827
    %v864 = vunpack.c.l.b16 %v828
    %v865 = vunpack.c.l.b16 %v829
    %v866 = vunpack.c.l.b16 %v830
    %v867 = vunpack.c.l.b16 %v831
    %v868 = vunpack.c.l.b16 %v832
    %v869 = vunpack.c.l.b16 %v833
    %v870 = vunpack.c.l.b16 %v834
    %v871 = vunpack.c.l.b16 %v835
    %v872 = vpack.c.b16 %v857, %v856
    %v873 = vpack.c.b16 %v859, %v858
    %v874 = vpack.c.b16 %v861, %v860
    %v875 = vpack.c.b16 %v863, %v862
    %v876 = vpack.c.b16 %v865, %v864
    %v877 = vpack.c.b16 %v867, %v866
    %v878 = vpack.c.b16 %v869, %v868
    %v879 = vpack.c.b16 %v871, %v870
    %888 = vmatpush.bf16.msra.mxu0 %v879
    %889 = vmatpush.bf16.msra.mxu0 %v878
    %890 = vmatpush.bf16.msra.mxu0 %v877
    %891 = vmatpush.bf16.msra.mxu0 %v876
    %892 = vmatpush.bf16.msra.mxu0 %v875
    %893 = vmatpush.bf16.msra.mxu0 %v874
    %894 = vmatpush.bf16.msra.mxu0 %v873
    %895 = vmatpush.bf16.msra.mxu0 %v872
    %896 = vmatmul.bf16.gmra.mxu0 %v819
    %v897 = vpop.f32.mrf.mxu0
    %v898 = vadd.f32 %v838, %v897
    %v899 = vpop.f32.mrf.mxu0
    %900 = vdwg.mxu0
    %vm901 = vcmp.lt.s32.totalorder %v177, 64
    %v902 = vsel %vm901, %v898, -1e+30
    %903 = vmax.xlane.f32.xlu0 %v902
    %v904 = vpop.xlane.xlu0 %903
    %v905 = vsub.f32 %v902, %v904
    %v906 = vmul.f32 %v905, 1.442695
    %v907 = vpow.pop %v906
    %908 = vadd.xlane.f32.xlu0 %v907
    %v909 = vpop.xlane.xlu0 %908
    %v910 = vrcp.pop %v909
    %v911 = vmul.f32 %v907, %v910
    %v912 = vmul.f32 %v187, %v911
    %v913 = vpack.c.bf16 %v912, %v912
    %v914 = vld [vmem:[#allocation13] sm:$0xff]
    %v915 = vld [vmem:[#allocation13 + $0x8] sm:$0xff]
    %v916 = vld [vmem:[#allocation13 + $0x10] sm:$0xff]
    %v917 = vld [vmem:[#allocation13 + $0x18] sm:$0xff]
    %v918 = vld [vmem:[#allocation13 + $0x20] sm:$0xff]
    %v919 = vld [vmem:[#allocation13 + $0x28] sm:$0xff]
    %v920 = vld [vmem:[#allocation13 + $0x30] sm:$0xff]
    %v921 = vld [vmem:[#allocation13 + $0x38] sm:$0xff]
    %v922 = vld [vmem:[#allocation13 + $0x40] sm:$0xff]
    %v923 = vld [vmem:[#allocation13 + $0x48] sm:$0xff]
    %v924 = vld [vmem:[#allocation13 + $0x50] sm:$0xff]
    %v925 = vld [vmem:[#allocation13 + $0x58] sm:$0xff]
    %v926 = vld [vmem:[#allocation13 + $0x60] sm:$0xff]
    %v927 = vld [vmem:[#allocation13 + $0x68] sm:$0xff]
    %v928 = vld [vmem:[#allocation13 + $0x70] sm:$0xff]
    %v929 = vld [vmem:[#allocation13 + $0x78] sm:$0xff]
    %v930 = vld [vmem:[%s12] sm:$0x3]
    %v932 = vperm.slane %v930, 0
    %v933 = vperm.slane %v930, 1
    %v952 = vunpack.c.l.b16 %v914
    %v953 = vunpack.c.h.b16 %v914
    %v954 = vunpack.c.l.b16 %v915
    %v955 = vunpack.c.h.b16 %v915
    %v956 = vunpack.c.l.b16 %v916
    %v957 = vunpack.c.h.b16 %v916
    %v958 = vunpack.c.l.b16 %v917
    %v959 = vunpack.c.h.b16 %v917
    %v960 = vunpack.c.l.b16 %v918
    %v961 = vunpack.c.h.b16 %v918
    %v962 = vunpack.c.l.b16 %v919
    %v963 = vunpack.c.h.b16 %v919
    %v964 = vunpack.c.l.b16 %v920
    %v965 = vunpack.c.h.b16 %v920
    %v966 = vunpack.c.l.b16 %v921
    %v967 = vunpack.c.h.b16 %v921
    %v968 = vunpack.c.l.b16 %v922
    %v969 = vunpack.c.h.b16 %v922
    %v970 = vunpack.c.l.b16 %v923
    %v971 = vunpack.c.h.b16 %v923
    %v972 = vunpack.c.l.b16 %v924
    %v973 = vunpack.c.h.b16 %v924
    %v974 = vunpack.c.l.b16 %v925
    %v975 = vunpack.c.h.b16 %v925
    %v976 = vunpack.c.l.b16 %v926
    %v977 = vunpack.c.h.b16 %v926
    %v978 = vunpack.c.l.b16 %v927
    %v979 = vunpack.c.h.b16 %v927
    %v980 = vunpack.c.l.b16 %v928
    %v981 = vunpack.c.h.b16 %v928
    %v982 = vunpack.c.l.b16 %v929
    %v983 = vunpack.c.h.b16 %v929
    %v984 = vpack.c.b16 %v954, %v952
    %v985 = vpack.c.b16 %v955, %v953
    %v986 = vpack.c.b16 %v958, %v956
    %v987 = vpack.c.b16 %v959, %v957
    %v988 = vpack.c.b16 %v962, %v960
    %v989 = vpack.c.b16 %v963, %v961
    %v990 = vpack.c.b16 %v966, %v964
    %v991 = vpack.c.b16 %v967, %v965
    %v992 = vpack.c.b16 %v970, %v968
    %v993 = vpack.c.b16 %v971, %v969
    %v994 = vpack.c.b16 %v974, %v972
    %v995 = vpack.c.b16 %v975, %v973
    %v996 = vpack.c.b16 %v978, %v976
    %v997 = vpack.c.b16 %v979, %v977
    %v998 = vpack.c.b16 %v982, %v980
    %v999 = vpack.c.b16 %v983, %v981
    %1016 = vmatpush.bf16.msra.mxu0 %v998
    %1017 = vmatpush.bf16.msra.mxu0 %v996
    %1018 = vmatpush.bf16.msra.mxu0 %v994
    %1019 = vmatpush.bf16.msra.mxu0 %v992
    %1020 = vmatpush.bf16.msra.mxu0 %v990
    %1021 = vmatpush.bf16.msra.mxu0 %v988
    %1022 = vmatpush.bf16.msra.mxu0 %v986
    %1023 = vmatpush.bf16.msra.mxu0 %v984
    %1024 = vmatmul.bf16.gmra.mxu0 %v913
    %v1025 = vpop.f32.mrf.mxu0
    %v1026 = vadd.f32 %v932, %v1025
    %v1027 = vpop.f32.mrf.mxu0
    %1028 = vdwg.mxu0
    %1029 = vmatpush.bf16.msra.mxu0 %v999
    %1030 = vmatpush.bf16.msra.mxu0 %v997
    %1031 = vmatpush.bf16.msra.mxu0 %v995
    %1032 = vmatpush.bf16.msra.mxu0 %v993
    %1033 = vmatpush.bf16.msra.mxu0 %v991
    %1034 = vmatpush.bf16.msra.mxu0 %v989
    %1035 = vmatpush.bf16.msra.mxu0 %v987
    %1036 = vmatpush.bf16.msra.mxu0 %v985
    %1037 = vmatmul.bf16.gmra.mxu0 %v913
    %v1038 = vpop.f32.mrf.mxu0
    %v1039 = vadd.f32 %v933, %v1038
    %v1040 = vpop.f32.mrf.mxu0
    %1041 = vdwg.mxu0
    %v1042 = vpack.c.bf16 %v1026, %v1026
    %v1043 = vpack.c.bf16 %v1039, %v1039
    %v1044 = vld [vmem:[#allocation14] sm:$0xf]
    %v1045 = vld [vmem:[#allocation14 + $0x4] sm:$0xf]
    %v1046 = vld [vmem:[#allocation14 + $0x8] sm:$0xf]
    %v1047 = vld [vmem:[#allocation14 + $0xc] sm:$0xf]
    %v1048 = vld [vmem:[#allocation14 + $0x10] sm:$0xf]
    %v1049 = vld [vmem:[#allocation14 + $0x14] sm:$0xf]
    %v1050 = vld [vmem:[#allocation14 + $0x18] sm:$0xf]
    %v1051 = vld [vmem:[#allocation14 + $0x1c] sm:$0xf]
    %v1052 = vld [vmem:[#allocation14 + $0x20] sm:$0xf]
    %v1053 = vld [vmem:[#allocation14 + $0x24] sm:$0xf]
    %v1054 = vld [vmem:[#allocation14 + $0x28] sm:$0xf]
    %v1055 = vld [vmem:[#allocation14 + $0x2c] sm:$0xf]
    %v1056 = vld [vmem:[#allocation14 + $0x30] sm:$0xf]
    %v1057 = vld [vmem:[#allocation14 + $0x34] sm:$0xf]
    %v1058 = vld [vmem:[#allocation14 + $0x38] sm:$0xf]
    %v1059 = vld [vmem:[#allocation14 + $0x3c] sm:$0xf]
    %v1060 = vld [vmem:[#allocation14 + $0x40] sm:$0xf]
    %v1061 = vld [vmem:[#allocation14 + $0x44] sm:$0xf]
    %v1062 = vld [vmem:[#allocation14 + $0x48] sm:$0xf]
    %v1063 = vld [vmem:[#allocation14 + $0x4c] sm:$0xf]
    %v1064 = vld [vmem:[#allocation14 + $0x50] sm:$0xf]
    %v1065 = vld [vmem:[#allocation14 + $0x54] sm:$0xf]
    %v1066 = vld [vmem:[#allocation14 + $0x58] sm:$0xf]
    %v1067 = vld [vmem:[#allocation14 + $0x5c] sm:$0xf]
    %v1068 = vld [vmem:[#allocation14 + $0x60] sm:$0xf]
    %v1069 = vld [vmem:[#allocation14 + $0x64] sm:$0xf]
    %v1070 = vld [vmem:[#allocation14 + $0x68] sm:$0xf]
    %v1071 = vld [vmem:[#allocation14 + $0x6c] sm:$0xf]
    %v1072 = vld [vmem:[#allocation14 + $0x70] sm:$0xf]
    %v1073 = vld [vmem:[#allocation14 + $0x74] sm:$0xf]
    %v1074 = vld [vmem:[#allocation14 + $0x78] sm:$0xf]
    %v1075 = vld [vmem:[#allocation14 + $0x7c] sm:$0xf]
    %v1076 = vld [vmem:[%s14] sm:$0x1]
    %v1078 = vperm.slane %v1076, 0
    %v1112 = vunpack.c.l.b16 %v1044
    %v1113 = vunpack.c.l.b16 %v1045
    %v1114 = vunpack.c.l.b16 %v1046
    %v1115 = vunpack.c.l.b16 %v1047
    %v1116 = vunpack.c.l.b16 %v1048
    %v1117 = vunpack.c.l.b16 %v1049
    %v1118 = vunpack.c.l.b16 %v1050
    %v1119 = vunpack.c.l.b16 %v1051
    %v1120 = vunpack.c.l.b16 %v1052
    %v1121 = vunpack.c.l.b16 %v1053
    %v1122 = vunpack.c.l.b16 %v1054
    %v1123 = vunpack.c.l.b16 %v1055
    %v1124 = vunpack.c.l.b16 %v1056
    %v1125 = vunpack.c.l.b16 %v1057
    %v1126 = vunpack.c.l.b16 %v1058
    %v1127 = vunpack.c.l.b16 %v1059
    %v1128 = vunpack.c.l.b16 %v1060
    %v1129 = vunpack.c.l.b16 %v1061
    %v1130 = vunpack.c.l.b16 %v1062
    %v1131 = vunpack.c.l.b16 %v1063
    %v1132 = vunpack.c.l.b16 %v1064
    %v1133 = vunpack.c.l.b16 %v1065
    %v1134 = vunpack.c.l.b16 %v1066
    %v1135 = vunpack.c.l.b16 %v1067
    %v1136 = vunpack.c.l.b16 %v1068
    %v1137 = vunpack.c.l.b16 %v1069
    %v1138 = vunpack.c.l.b16 %v1070
    %v1139 = vunpack.c.l.b16 %v1071
    %v1140 = vunpack.c.l.b16 %v1072
    %v1141 = vunpack.c.l.b16 %v1073
    %v1142 = vunpack.c.l.b16 %v1074
    %v1143 = vunpack.c.l.b16 %v1075
    %v1144 = vpack.c.b16 %v1113, %v1112
    %v1145 = vpack.c.b16 %v1115, %v1114
    %v1146 = vpack.c.b16 %v1117, %v1116
    %v1147 = vpack.c.b16 %v1119, %v1118
    %v1148 = vpack.c.b16 %v1121, %v1120
    %v1149 = vpack.c.b16 %v1123, %v1122
    %v1150 = vpack.c.b16 %v1125, %v1124
    %v1151 = vpack.c.b16 %v1127, %v1126
    %v1152 = vpack.c.b16 %v1129, %v1128
    %v1153 = vpack.c.b16 %v1131, %v1130
    %v1154 = vpack.c.b16 %v1133, %v1132
    %v1155 = vpack.c.b16 %v1135, %v1134
    %v1156 = vpack.c.b16 %v1137, %v1136
    %v1157 = vpack.c.b16 %v1139, %v1138
    %v1158 = vpack.c.b16 %v1141, %v1140
    %v1159 = vpack.c.b16 %v1143, %v1142
    %1176 = vmatpush.bf16.msra.mxu0 %v1151
    %1177 = vmatpush.bf16.msra.mxu0 %v1150
    %1178 = vmatpush.bf16.msra.mxu0 %v1149
    %1179 = vmatpush.bf16.msra.mxu0 %v1148
    %1180 = vmatpush.bf16.msra.mxu0 %v1147
    %1181 = vmatpush.bf16.msra.mxu0 %v1146
    %1182 = vmatpush.bf16.msra.mxu0 %v1145
    %1183 = vmatpush.bf16.msra.mxu0 %v1144
    %1184 = vmatmul.bf16.gmra.mxu0 %v1042
    %v1185 = vpop.f32.mrf.mxu0
    %v1186 = vadd.f32 %v1078, %v1185
    %v1187 = vpop.f32.mrf.mxu0
    %1188 = vdwg.mxu0
    %1189 = vmatpush.bf16.msra.mxu0 %v1159
    %1190 = vmatpush.bf16.msra.mxu0 %v1158
    %1191 = vmatpush.bf16.msra.mxu0 %v1157
    %1192 = vmatpush.bf16.msra.mxu0 %v1156
    %1193 = vmatpush.bf16.msra.mxu0 %v1155
    %1194 = vmatpush.bf16.msra.mxu0 %v1154
    %1195 = vmatpush.bf16.msra.mxu0 %v1153
    %1196 = vmatpush.bf16.msra.mxu0 %v1152
    %1197 = vmatmul.bf16.gmra.mxu0 %v1043
    %v1198 = vpop.f32.mrf.mxu0
    %v1199 = vadd.f32 %v1186, %v1198
    %v1200 = vpop.f32.mrf.mxu0
    %1201 = vdwg.mxu0
    %v1202 = vpack.c.bf16 %v790, %v764
    %v1203 = vpack.c.bf16 %v816, %v816
    %1204 = vst [vmem:[#allocation16] sm:$0xff] %v1202
    %1205 = vst [vmem:[#allocation16 + $0x8] sm:$0xf] %v1203
    %v1206 = vpack.c.bf16 %v1199, %v1199
    %1207 = vst [vmem:[#allocation16 + $0xc] sm:$0xf] %v1206
    // Predicated region
    $region94: #{tpu_custom_call.1} parent=1 // pred_check
      _
    $region95: #{tpu_custom_call.1} parent=1 // pred_check_branch
      %1209 = sbr.rel (0) target = $region97
    $region96: #{tpu_custom_call.1} parent=1 // pred_region
      %1211 = vsyncadd [#allocation4], 0
      %s1213 = sshll.u32 [#allocation16], 4
      %s1214 = int_to_ptr.vmem [resolvable:$true] %s1213
      %s1215 = sshll.u32 %s15, 4
      %s1216 = int_to_ptr.hbm [resolvable:$true] %s1215
      %1218 = dma.vmem_to_hbm [thread:$0]  %s1214, 256, %s1216, [#allocation4]
    $region97: #{tpu_custom_call.1} parent=1 // pred_fallthru
      _
    // Predicated region
    $region98: #{tpu_custom_call.1} parent=1 // pred_check
      _
    $region99: #{tpu_custom_call.1} parent=1 // pred_check_branch
      %1220 = sbr.rel (0) target = $region101
    $region100: #{tpu_custom_call.1} parent=1 // pred_region
      %1222 = dma.done [#allocation4], 256
    $region101: #{tpu_custom_call.1} parent=1 // pred_fallthru
      _
    %1223 = vsyncpa [#allocation3], 1
    %1224 = vsyncpa [#allocation6], 1
    %1225 = vsyncpa [#allocation9], 1
    %1226 = vsyncpa [#allocation12], 1
    %1227 = vsyncpa [#allocation15], 1
    %1228 = vsyncpa [#allocation4], 1

</llo_original>
